<compile_context>
chip_gen: v5e
topology: v5e:2x2
jax: 0.10.0
libtpu: 0.0.40
codegen_flags: <defaults>
</compile_context>

<pallas_src>
import functools
import math

import jax
import jax.numpy as jnp
from jax.experimental import pallas as pl
from jax.experimental.pallas import tpu as pltpu


def _inv_softplus(bias: float) -> float:
    """Python-scalar inv_softplus (matches torch .expm1().clamp_min(1e-6).log())."""
    return math.log(max(math.expm1(bias), 1e-6))


def _softplus_math(x, bias_shift: float, min_val: float, compute_dtype):
    """Stable biased softplus, matching PyTorch F.softplus(threshold=20)."""
    z = x.astype(compute_dtype) + jnp.asarray(bias_shift, compute_dtype)
    # softplus(z) = z if z > 20 else max(z,0) + log1p(exp(-|z|))   (never overflows)
    sp = jnp.where(
        z > jnp.asarray(20.0, compute_dtype),
        z,
        jnp.maximum(z, jnp.asarray(0.0, compute_dtype)) + jnp.log1p(jnp.exp(-jnp.abs(z))),
    )
    return sp + jnp.asarray(min_val, compute_dtype)


def _biased_softplus_kernel(x_ref, o_ref, *, bias_shift: float, min_val: float, compute_dtype):
    o_ref[...] = _softplus_math(x_ref[...], bias_shift, min_val, compute_dtype).astype(o_ref.dtype)


def biased_softplus_pallas(x: jax.Array, bias: float = 1.0, min_val: float = 0.01) -> jax.Array:
    """Apply biased_softplus elementwise to x (any shape, e.g. NCHW)."""
    bias_shift = _inv_softplus(bias - min_val)

    orig_shape = x.shape
    orig_dtype = x.dtype
    n = x.size
    if n == 0:
        return x
    itemsize = jnp.dtype(orig_dtype).itemsize

    # bf16 math on bf16 inputs (v6e/v7x bf16 EUP/VPU); f32 otherwise.
    compute_dtype = jnp.bfloat16 if orig_dtype == jnp.bfloat16 else jnp.float32

    # dtype-aware sublane granularity: 8 (f32), 16 (bf16), 32 (int8)
    sub = max(8, 32 // itemsize)

    # Lane-dense slab width: wide for big inputs, narrow for tiny ones.
    if n >= (1 << 20):
        lanes = 1024
    elif n >= (1 << 14):
        lanes = 512
    else:
        lanes = 128

    x_flat = x.reshape(-1)
    rows = n // lanes
    main_n = rows * lanes
    tail_n = n - main_n

    if rows == 0:
        # Whole input is smaller than one lane row -> a kernel launch buys nothing.
        out = _softplus_math(x_flat, bias_shift, min_val, compute_dtype).astype(orig_dtype)
        return out.reshape(orig_shape)

    # ~4 MiB blocks (per-step overhead < 5%); in+out double-buffered = 16 MiB resident,
    # made safe everywhere (incl. v5e's 16 MiB scoped default) by an explicit 32 MiB limit.
    target_block_bytes = 4 * 1024 * 1024
    tile_rows = max(sub, (target_block_bytes // (lanes * itemsize)) // sub * sub)
    rows_aligned = pl.cdiv(rows, sub) * sub
    tile_rows = min(tile_rows, rows_aligned)
    grid_steps = pl.cdiv(rows, tile_rows)

    # Guarantee >= 2 grid steps when there is enough work so ("parallel",) semantics can
    # shard across v7x's two TensorCores (each TC streams ~half the slab).
    if grid_steps == 1 and rows > sub:
        tile_rows = pl.cdiv(pl.cdiv(rows, 2), sub) * sub
        grid_steps = pl.cdiv(rows, tile_rows)

    # Prefix of the flat array -> (rows, lanes) slab. No jnp.pad: the partial last *block*
    # (rows % tile_rows != 0) is masked automatically by Pallas.
    x_main = x_flat if tail_n == 0 else x_flat[:main_n]
    x2d = x_main.reshape(rows, lanes)

    kernel = functools.partial(
        _biased_softplus_kernel,
        bias_shift=bias_shift,
        min_val=min_val,
        compute_dtype=compute_dtype,
    )

    out2d = pl.pallas_call(
        kernel,
        out_shape=jax.ShapeDtypeStruct((rows, lanes), orig_dtype),
        grid_spec=pltpu.PrefetchScalarGridSpec(
            num_scalar_prefetch=0,
            grid=(grid_steps,),
            in_specs=[pl.BlockSpec((tile_rows, lanes), lambda i: (i, 0))],
            out_specs=pl.BlockSpec((tile_rows, lanes), lambda i: (i, 0)),
        ),
        compiler_params=pltpu.CompilerParams(
            dimension_semantics=("parallel",),
            vmem_limit_bytes=32 * 1024 * 1024,
        ),
        cost_estimate=pl.CostEstimate(
            flops=5 * main_n,
            transcendentals=2 * main_n,
            bytes_accessed=2 * main_n * itemsize,
        ),
    )(x2d)

    out_flat = out2d.reshape(-1)
    if tail_n:
        # < `lanes` leftover elements: plain jnp, negligible cost, no full-array copies.
        tail_out = _softplus_math(
            x_flat[main_n:], bias_shift, min_val, compute_dtype
        ).astype(orig_dtype)
        out_flat = jnp.concatenate([out_flat, tail_out])
    return out_flat.reshape(orig_shape)


def _reference(x, bias=1.0, min_val=0.01):
    bias_shift = _inv_softplus(bias - min_val)
    z = x.astype(jnp.float32) + bias_shift
    sp = jnp.where(z > 20.0, z, jnp.maximum(z, 0.0) + jnp.log1p(jnp.exp(-jnp.abs(z))))
    return (sp + min_val).astype(x.dtype)


if __name__ == "__main__":
    key = jax.random.PRNGKey(0)

    # Primary case: small NCHW activation tensor (aligned: 2048 = 16 * 128, zero-copy path;
    # tile split forces 2 grid steps -> exercises megacore sharding + partial-block-free path).
    x = jax.random.normal(key, (2, 4, 16, 16), dtype=jnp.float32)
    y = jax.block_until_ready(biased_softplus_pallas(x, bias=1.0, min_val=0.01))
    y_ref = _reference(x, bias=1.0, min_val=0.01)
    assert y.shape == x.shape and y.dtype == x.dtype
    assert jnp.allclose(y, y_ref, atol=1e-5, rtol=1e-5)

    # sanity: softplus(0 + bias_shift) + min_val ≈ bias
    z0 = biased_softplus_pallas(jnp.zeros((8, 128), jnp.float32), bias=1.0, min_val=0.01)
    assert jnp.allclose(z0, 1.0, atol=1e-5)

    # Ragged shape with a Pallas main slab + jnp tail (1500 = 11*128 + 92) and a masked
    # partial last row-block (11 rows with 8-row blocks).
    x_rag = jax.random.normal(jax.random.PRNGKey(3), (5, 300), dtype=jnp.float32)
    y_rag = jax.block_until_ready(biased_softplus_pallas(x_rag, bias=2.0, min_val=0.1))
    assert jnp.allclose(y_rag, _reference(x_rag, bias=2.0, min_val=0.1), atol=1e-5, rtol=1e-5)

    # Tiny shape (< 128 elements): pure-jnp fallback path (no kernel launch needed).
    x_odd = jax.random.normal(jax.random.PRNGKey(1), (3, 5, 7), dtype=jnp.float32)
    y_odd = jax.block_until_ready(biased_softplus_pallas(x_odd, bias=2.0, min_val=0.1))
    assert jnp.allclose(y_odd, _reference(x_odd, bias=2.0, min_val=0.1), atol=1e-5, rtol=1e-5)

    # bf16 input: bf16 math in-kernel, 16-row sublane granularity.
    x_bf16 = jax.random.normal(jax.random.PRNGKey(2), (2, 4, 16, 16)).astype(jnp.bfloat16)
    y_bf16 = jax.block_until_ready(biased_softplus_pallas(x_bf16, bias=1.0, min_val=0.01))
    assert y_bf16.dtype == jnp.bfloat16
    assert jnp.allclose(
        y_bf16.astype(jnp.float32),
        _reference(x_bf16, bias=1.0, min_val=0.01).astype(jnp.float32),
        atol=1e-2, rtol=1e-2,
    )

    print("KERNEL_OK")
</pallas_src>

<mosaic_0001>
module attributes {stable_mosaic.version = 11 : i64} {
  func.func @_biased_softplus_kernel(%arg0: i32, %arg1: memref<8x128xf32, #tpu.memory_space<vmem>>, %arg2: memref<8x128xf32, #tpu.memory_space<vmem>>) attributes {dimension_semantics = [#tpu.dimension_semantics<parallel>], iteration_bounds = array<i64: 2>, scalar_prefetch = 0 : i64, scratch_operands = 0 : i64, tpu.core_type = #tpu.core_type<tc>, window_params = [{transform_indices = @transform_0, window_bounds = array<i64: 8, 128>}, {transform_indices = @transform_1, window_bounds = array<i64: 8, 128>}]} {
    %c0 = arith.constant 0 : index
    %c0_0 = arith.constant 0 : index
    %0 = vector.load %arg1[%c0, %c0_0] : memref<8x128xf32, #tpu.memory_space<vmem>>, vector<8x128xf32>
    %cst = arith.constant 0.525458694 : f32
    %1 = vector.broadcast %cst : f32 to vector<8x128xf32>
    %2 = arith.addf %0, %1 : vector<8x128xf32>
    %cst_1 = arith.constant 2.000000e+01 : f32
    %3 = vector.broadcast %cst_1 : f32 to vector<8x128xf32>
    %4 = arith.cmpf ogt, %2, %3 : vector<8x128xf32>
    %cst_2 = arith.constant 0.000000e+00 : f32
    %5 = vector.broadcast %cst_2 : f32 to vector<8x128xf32>
    %6 = arith.maximumf %2, %5 : vector<8x128xf32>
    %7 = math.absf %2 : vector<8x128xf32>
    %cst_3 = arith.constant 0.000000e+00 : f32
    %8 = vector.broadcast %cst_3 : f32 to vector<8x128xf32>
    %9 = arith.subf %8, %7 : vector<8x128xf32>
    %10 = math.exp %9 : vector<8x128xf32>
    %11 = math.log1p %10 : vector<8x128xf32>
    %12 = arith.addf %6, %11 : vector<8x128xf32>
    %13 = arith.select %4, %2, %12 : vector<8x128xi1>, vector<8x128xf32>
    %cst_4 = arith.constant 0.00999999977 : f32
    %14 = vector.broadcast %cst_4 : f32 to vector<8x128xf32>
    %15 = arith.addf %13, %14 : vector<8x128xf32>
    %c0_5 = arith.constant 0 : index
    %c0_6 = arith.constant 0 : index
    %16 = vector.load %arg2[%c0_5, %c0_6] : memref<8x128xf32, #tpu.memory_space<vmem>>, vector<8x128xf32>
    tpu.vector_store %arg2[%c0_5, %c0_6], %15 {strides = array<i32>} : memref<8x128xf32, #tpu.memory_space<vmem>>, vector<8x128xf32>,
    return
  }
  func.func @transform_0(%arg0: i32) -> (i32, i32) {
    %c0_i32 = arith.constant 0 : i32
    %c0_i32_0 = arith.constant 0 : i32
    return %arg0, %c0_i32 : i32, i32
  }
  func.func @transform_1(%arg0: i32) -> (i32, i32) {
    %c0_i32 = arith.constant 0 : i32
    %c0_i32_0 = arith.constant 0 : i32
    return %arg0, %c0_i32 : i32, i32
  }
}

</mosaic_0001>

<llo_original>
// kernel: tpu_custom_call.1
$region0: #{tpu_custom_call.1}
  #allocation0 [shape = 'u32[]', space=smem, size = 0x4, offset = 0x4, fixed_abs, tag = 'smem constant byte address 0x4 - core index']
  #allocation1 [shape = 'u32[72,128]{1,0:T(1,128)}', space=vmem, size = 0x9000, scoped, tag = 'internal scratch']
  %s0 = inlined_call_operand.hbm [shape: f32[16,128], index: 0, kind: input, shape index: {}]
  %s1 = inlined_call_operand.hbm [shape: f32[16,128], index: 1, kind: output, shape index: {}]
  %s2 = sld [smem:[#allocation0]]
  $region41: #{tpu_custom_call.1} parent=0
    _
  %s4 = ssub.s32 1, %s2
  %s5 = scalar_select 0, %s4, %s2
  $region1: #{tpu_custom_call.1} parent=0
    #allocation2 [shape = 'u8[8192]{0}', space=vmem, size = 0x2000, scoped, tag = 'input window, operand 0']
    #allocation3 [shape = 's32[2]{0}', space=sflag, size = 0x8, scoped, tag = 'scoped memory for tpu_custom_call.1']
    #allocation4 [shape = 's32[2]{0}', space=sflag, size = 0x8, scoped, tag = 'scoped memory for tpu_custom_call.1']
    #allocation5 [shape = 'u8[8192]{0}', space=vmem, size = 0x2000, scoped, tag = 'output window, operand 0']
    %6 = vsyncpa [#allocation3], 0
    %s7 = scalar_lea.sflag [#allocation3], 1
    %8 = vsyncpa %s7, 0
    %9 = vsyncpa [#allocation4], 0
    %s10 = scalar_lea.sflag [#allocation4], 1
    %11 = vsyncpa %s10, 0
    loop: start=0, step=1, limit=4
    $region2: #{tpu_custom_call.1} parent=1 // loop_pre_header
      _
    $region3: #{tpu_custom_call.1} parent=1 // loop_header
      %s13 = sphi 0, %s17
      %p14 = scmp.ge.s32.totalorder %s13, 4
      %s23 = sphi 0, %s25
      %s26 = sphi 0, %s23
      %s27 = sphi 0, %s26
      %s43 = sphi 0, %s27
      %s49 = sphi 0, %s51
      %s52 = sphi 0, %s49
      %s53 = sphi 0, %s52
      %s69 = sphi 0, %s53
    $region4: #{tpu_custom_call.1} parent=1 // loop_header_branch
      %16 = sbr.rel (%p14) target = $region8
    $region5: #{tpu_custom_call.1} parent=1 // loop_body
      %s18 = ssub.s32 %s13, 1
      %s19 = ssub.s32 %s13, 2
      %s20 = sadd.s32 %s13, 1
      %s21 = ssub.s32 %s13, %s20
      %p22 = scmp.eq.s32.totalorder %s21, 0
      %s24 = sadd.s32 %s23, 1
      %s25 = scalar_select %p22, %s23, %s24
      %p28 = pneg %p22
      %p29 = scmp.eq.s32.totalorder %s13, 1
      %p30 = por %p28, %p29
      %p31 = scmp.ne.s32.totalorder %s23, %s26
      %p32 = scmp.eq.s32.totalorder %s13, 0
      %p33 = por %p31, %p32
      %p34 = scmp.ne.s32.totalorder %s23, %s26
      %p35 = scmp.eq.s32.totalorder %s18, 1
      %p36 = por %p34, %p35
      %p37 = scmp.ne.s32.totalorder %s26, %s27
      %p38 = scmp.eq.s32.totalorder %s18, 0
      %p39 = por %p37, %p38
      %p40 = scmp.ne.s32.totalorder %s26, %s27
      %p41 = scmp.eq.s32.totalorder %s19, 1
      %p42 = por %p40, %p41
      %p44 = scmp.ne.s32.totalorder %s27, %s43
      %p45 = scmp.eq.s32.totalorder %s19, 0
      %p46 = por %p44, %p45
      %s47 = ssub.s32 %s13, %s20
      %p48 = scmp.eq.s32.totalorder %s47, 0
      %s50 = sadd.s32 %s49, 1
      %s51 = scalar_select %p48, %s49, %s50
      %p54 = pneg %p48
      %p55 = scmp.eq.s32.totalorder %s13, 1
      %p56 = por %p54, %p55
      %p57 = scmp.ne.s32.totalorder %s49, %s52
      %p58 = scmp.eq.s32.totalorder %s13, 0
      %p59 = por %p57, %p58
      %p60 = scmp.ne.s32.totalorder %s49, %s52
      %p61 = scmp.eq.s32.totalorder %s18, 1
      %p62 = por %p60, %p61
      %p63 = scmp.ne.s32.totalorder %s52, %s53
      %p64 = scmp.eq.s32.totalorder %s18, 0
      %p65 = por %p63, %p64
      %p66 = scmp.ne.s32.totalorder %s52, %s53
      %p67 = scmp.eq.s32.totalorder %s19, 1
      %p68 = por %p66, %p67
      %p70 = scmp.ne.s32.totalorder %s53, %s69
      %p71 = scmp.eq.s32.totalorder %s19, 0
      %p72 = por %p70, %p71
      %p73 = scmp.le.s32.totalorder 1, %s13
      %p74 = scmp.lt.s32.totalorder %s13, 3
      %p75 = pnand %p73, %p74
      %p76 = pneg %p75
      // Predicated region
      $region9: #{tpu_custom_call.1} parent=5 // pred_check
        _
      $region10: #{tpu_custom_call.1} parent=5 // pred_check_branch
        %78 = sbr.rel (%p75) target = $region12
      $region11: #{tpu_custom_call.1} parent=5 // pred_region
        %s79 = ssub.s32 %s13, 1
      $region12: #{tpu_custom_call.1} parent=5 // pred_fallthru
        _
      %p80 = scmp.lt.s32.totalorder %s13, 2
      // Predicated region
      $region13: #{tpu_custom_call.1} parent=5 // pred_check
        %p81 = pneg %p80
      $region14: #{tpu_custom_call.1} parent=5 // pred_check_branch
        %83 = sbr.rel (%p81) target = $region16
      $region15: #{tpu_custom_call.1} parent=5 // pred_region
        // Predicated region
        $region17: #{tpu_custom_call.1} parent=15 // pred_check
          %p84 = pneg %p33
        $region18: #{tpu_custom_call.1} parent=15 // pred_check_branch
          %86 = sbr.rel (%p84) target = $region20
        $region19: #{tpu_custom_call.1} parent=15 // pred_region
          %s87 = sand.u32 %s23, 1
          %s88 = scalar_lea.sflag [#allocation3], %s87
          %s89 = sand.u32 %s23, 1
          %s90 = smul.addr %s89, 8
          %s91 = scalar_lea.vmem [#allocation2], %s90
          %93 = vsyncadd %s88, 0
          %s94 = smul.addr %s13, 8
          %s95 = scalar_lea.hbm %s0, %s94
          %s97 = sshll.u32 %s95, 4
          %s98 = int_to_ptr.hbm [resolvable:$true] %s97
          %s99 = sshll.u32 %s91, 4
          %s100 = int_to_ptr.vmem [resolvable:$true] %s99
          %102 = dma.hbm_to_vmem [thread:$0]  %s98, 128, %s100, %s88
        $region20: #{tpu_custom_call.1} parent=15 // pred_fallthru
          _
      $region16: #{tpu_custom_call.1} parent=5 // pred_fallthru
        _
      %p103 = scmp.le.s32.totalorder 1, %s13
      %p104 = scmp.lt.s32.totalorder %s13, 3
      %p105 = pnand %p103, %p104
      %p106 = pneg %p105
      // Predicated region
      $region21: #{tpu_custom_call.1} parent=5 // pred_check
        _
      $region22: #{tpu_custom_call.1} parent=5 // pred_check_branch
        %108 = sbr.rel (%p105) target = $region24
      $region23: #{tpu_custom_call.1} parent=5 // pred_region
        %s109 = ssub.s32 %s13, 1
        %s110 = sand.u32 %s26, 1
        %s111 = scalar_lea.sflag [#allocation3], %s110
        %s112 = sand.u32 %s26, 1
        %s113 = smul.addr %s112, 8
        %s114 = scalar_lea.vmem [#allocation2], %s113
        // Predicated region
        $region25: #{tpu_custom_call.1} parent=23 // pred_check
          %p115 = pneg %p39
        $region26: #{tpu_custom_call.1} parent=23 // pred_check_branch
          %117 = sbr.rel (%p115) target = $region28
        $region27: #{tpu_custom_call.1} parent=23 // pred_region
          %119 = dma.done %s111, 128
        $region28: #{tpu_custom_call.1} parent=23 // pred_fallthru
          _
        %s120 = sand.u32 %s26, 1
        %s121 = scalar_lea.sflag [#allocation3], %s120
        %s122 = sand.u32 %s26, 1
        %s123 = smul.addr %s122, 8
        %s124 = scalar_lea.vmem [#allocation2], %s123
        %p125 = pneg %p39
        %p126 = pneg %p36
        %p127 = pneg %p65
        %p128 = pneg %p62
        %s129 = sand.u32 %s52, 1
        %s130 = scalar_lea.sflag [#allocation4], %s129
        %s131 = sand.u32 %s52, 1
        %s132 = smul.addr %s131, 8
        %s133 = scalar_lea.vmem [#allocation5], %s132
        %v134 = vld [vmem:[%s114] sm:$0xff]
        %v135 = vadd.f32 %v134, 0.5254587
        %vm136 = vcmp.gt.f32.partialorder %v135, 20.0
        %v137 = vmax.f32 %v135, 0.0
        %v138 = vand.u32 2147483647, %v135
        %v139 = vsub.f32 0.0, %v138
        %v140 = vmul.f32 %v139, 1.442695
        %v141 = vpow.pop %v140
        %v142 = vadd.f32 %v141, 1.0
        %v143 = vlog2.pop %v142
        %v144 = vmul.f32 %v143, 0.6931472
        %v145 = vmul.f32 -0.5, %v141
        %v146 = vadd.f32 %v145, 1.0
        %v147 = vmul.f32 %v146, %v141
        %v148 = vand.u32 2147483647, %v141
        %vm149 = vcmp.lt.f32.partialorder %v148, 0.0004427343
        %v150 = vsel %vm149, %v147, %v144
        %v151 = vadd.f32 %v137, %v150
        %v152 = vsel %vm136, %v135, %v151
        %v153 = vadd.f32 %v152, 0.01
        %154 = vst [vmem:[%s133] sm:$0xff] %v153
        %s155 = sand.u32 %s52, 1
        %s156 = scalar_lea.sflag [#allocation4], %s155
        %s157 = sand.u32 %s52, 1
        %s158 = smul.addr %s157, 8
        %s159 = scalar_lea.vmem [#allocation5], %s158
        // Predicated region
        $region29: #{tpu_custom_call.1} parent=23 // pred_check
          %p160 = pneg %p62
        $region30: #{tpu_custom_call.1} parent=23 // pred_check_branch
          %162 = sbr.rel (%p160) target = $region32
        $region31: #{tpu_custom_call.1} parent=23 // pred_region
          %164 = vsyncadd %s156, 0
          %s165 = smul.addr %s18, 8
          %s166 = scalar_lea.hbm %s1, %s165
          %s168 = sshll.u32 %s159, 4
          %s169 = int_to_ptr.vmem [resolvable:$true] %s168
          %s170 = sshll.u32 %s166, 4
          %s171 = int_to_ptr.hbm [resolvable:$true] %s170
          %173 = dma.vmem_to_hbm [thread:$0]  %s169, 128, %s171, %s156
        $region32: #{tpu_custom_call.1} parent=23 // pred_fallthru
          _
      $region24: #{tpu_custom_call.1} parent=5 // pred_fallthru
        _
      %p174 = scmp.le.s32.totalorder 2, %s13
      // Predicated region
      $region33: #{tpu_custom_call.1} parent=5 // pred_check
        %p175 = pneg %p174
      $region34: #{tpu_custom_call.1} parent=5 // pred_check_branch
        %177 = sbr.rel (%p175) target = $region36
      $region35: #{tpu_custom_call.1} parent=5 // pred_region
        %s178 = ssub.s32 %s13, 2
        // Predicated region
        $region37: #{tpu_custom_call.1} parent=35 // pred_check
          %p179 = pneg %p68
        $region38: #{tpu_custom_call.1} parent=35 // pred_check_branch
          %181 = sbr.rel (%p179) target = $region40
        $region39: #{tpu_custom_call.1} parent=35 // pred_region
          %s182 = sand.u32 %s53, 1
          %s183 = scalar_lea.sflag [#allocation4], %s182
          %s184 = sand.u32 %s53, 1
          %s185 = smul.addr %s184, 8
          %s186 = scalar_lea.vmem [#allocation5], %s185
          %188 = dma.done %s183, 128
        $region40: #{tpu_custom_call.1} parent=35 // pred_fallthru
          _
      $region36: #{tpu_custom_call.1} parent=5 // pred_fallthru
        _
    $region6: #{tpu_custom_call.1} parent=1 // loop_footer
      %s17 = sadd.s32 1, %s13
    $region7: #{tpu_custom_call.1} parent=1 // loop_footer_branch
      %12 = sbr.rel target = $region3
    $region8: #{tpu_custom_call.1} parent=1 // loop_exit
      _
    %189 = vsyncpa [#allocation3], 1
    %s190 = scalar_lea.sflag [#allocation3], 1
    %191 = vsyncpa %s190, 1
    %192 = vsyncpa [#allocation4], 1
    %s193 = scalar_lea.sflag [#allocation4], 1
    %194 = vsyncpa %s193, 1

</llo_original>
